<compile_context>
chip_gen: v5e
topology: v5e:2x2
jax: 0.10.0
libtpu: 0.0.40
codegen_flags: <defaults>
</compile_context>

<pallas_src>
import functools

import numpy as np
import jax
import jax.numpy as jnp
from jax.experimental import pallas as pl
from jax.experimental.pallas import tpu as pltpu

CONST = 15.0 / np.pi ** 4


def plankian_kernel(x_ref, wcat_ref, bcat_ref, xinv_ref, o_ref, *, n_mix):
    x = x_ref[...]                                               # (Bt, D) f32

    # Fused linear layer on the MXU: [lin_mu | lin_w] in one push.
    lin = jnp.dot(x, wcat_ref[...],
                  preferred_element_type=jnp.float32) + bcat_ref[...]   # (Bt, 2M)
    mu_lin = lin[:, :n_mix]                                      # (Bt, M)
    w_lin = lin[:, n_mix:]                                       # (Bt, M)

    # Increments of the cumsum (cumsum itself is done in the M loop below).
    e = jnp.exp(mu_lin)                                          # (Bt, M)

    # Softmax over the mixture axis, with the Planck constant folded in.
    w_max = jnp.max(w_lin, axis=1, keepdims=True)
    w_exp = jnp.exp(w_lin - w_max)
    w = (CONST / jnp.sum(w_exp, axis=1, keepdims=True)) * w_exp  # (Bt, M)

    x_inv = xinv_ref[...]                                        # (1, Lt)

    bt = x.shape[0]
    lt = x_inv.shape[1]
    acc = jnp.zeros((bt, lt), jnp.float32)
    mu_run = jnp.zeros((bt, 1), jnp.float32)

    # Static unrolled loop over mixture components: peak live state is one
    # (Bt, Lt) accumulator instead of three (Bt, M, Lt) tensors.
    for m in range(n_mix):
        mu_run = mu_run + e[:, m:m + 1]                          # running cumsum
        y = mu_run * x_inv                                       # (Bt, Lt)
        f = jnp.exp(-y)
        yy = y * y
        y4 = yy * yy
        planck = y4 * f / (1.0 - f)                              # const folded into w
        acc = acc + w[:, m:m + 1] * planck

    o_ref[...] = acc                                             # lane-dense store


def _pick_tile(total, preferred, align):
    """Largest tile <= preferred that is a multiple of `align` and divides
    `total`; falls back to the full extent."""
    if total <= preferred:
        return total
    t = (min(preferred, total) // align) * align
    while t >= align:
        if total % t == 0:
            return t
        t -= align
    return total


def plankian_mixture(x_in, w_mu, b_mu, w_w, b_w, x_inv, *, b_tile=None, l_tile=None):
    x_in = jnp.asarray(x_in, jnp.float32)
    B, D = x_in.shape
    M = w_mu.shape[1]
    L = x_inv.shape[0]

    # Fuse the two linear layers' parameters in the wrapper.
    w_cat = jnp.concatenate([w_mu, w_w], axis=1).astype(jnp.float32)        # (D, 2M)
    b_cat = jnp.concatenate([b_mu, b_w]).reshape(1, 2 * M).astype(jnp.float32)
    x_inv2 = jnp.asarray(x_inv, jnp.float32).reshape(1, L)

    if b_tile is None:
        b_tile = _pick_tile(B, 128, 8)       # sized against 32 MiB scoped VMEM (v7x-safe)
    if l_tile is None:
        l_tile = _pick_tile(L, 512, 128)     # keep L (lane dim) a multiple of 128

    grid = (B // b_tile, L // l_tile)
    kernel = functools.partial(plankian_kernel, n_mix=M)

    return pl.pallas_call(
        kernel,
        out_shape=jax.ShapeDtypeStruct((B, L), jnp.float32),
        grid=grid,
        in_specs=[
            pl.BlockSpec((b_tile, D), lambda i, j: (i, 0)),      # x: batch tiles
            pl.BlockSpec((D, 2 * M), lambda i, j: (0, 0)),       # fused weights (resident)
            pl.BlockSpec((1, 2 * M), lambda i, j: (0, 0)),       # fused bias    (resident)
            pl.BlockSpec((1, l_tile), lambda i, j: (0, j)),      # x_inv: L tiles
        ],
        out_specs=pl.BlockSpec((b_tile, l_tile), lambda i, j: (i, j)),
        compiler_params=pltpu.CompilerParams(
            dimension_semantics=("parallel", "parallel")),
    )(x_in, w_cat, b_cat, x_inv2)


def reference(x_in, w_mu, b_mu, w_w, b_w, x_inv):
    mu = jnp.cumsum(jnp.exp(x_in @ w_mu + b_mu), axis=1)
    w = jax.nn.softmax(x_in @ w_w + b_w, axis=1)
    y = x_inv[None, None, :] * mu[:, :, None]
    f = jnp.exp(-y)
    planck = CONST * y ** 4 * f / (1.0 - f)
    return jnp.sum(planck * w[:, :, None], axis=1)


def _run_case(key, B, D, M, L, **tile_kwargs):
    k1, k2, k3, k4, k5 = jax.random.split(key, 5)
    bound = 1.0 / np.sqrt(D)
    w_mu = jax.random.uniform(k1, (D, M), jnp.float32, -bound, bound)
    b_mu = jax.random.uniform(k2, (M,), jnp.float32, -bound, bound)
    w_w = jax.random.uniform(k3, (D, M), jnp.float32, -bound, bound)
    b_w = jax.random.uniform(k4, (M,), jnp.float32, -bound, bound)

    x_grid = jnp.linspace(0.5, 10.0, L, dtype=jnp.float32)
    x_inv = 1.0 / x_grid
    x_in = jax.random.normal(k5, (B, D), jnp.float32)

    out = plankian_mixture(x_in, w_mu, b_mu, w_w, b_w, x_inv, **tile_kwargs)
    out = jax.block_until_ready(out)
    ref = reference(x_in, w_mu, b_mu, w_w, b_w, x_inv)
    assert out.shape == (B, L)
    np.testing.assert_allclose(np.asarray(out), np.asarray(ref), rtol=1e-4, atol=1e-5)


if __name__ == "__main__":
    key = jax.random.PRNGKey(0)
    k_a, k_b = jax.random.split(key)

    # Small shape matching the module (batch=8, input_size=32, n_mix=8, L=128).
    _run_case(k_a, B=8, D=32, M=8, L=128)

    # Exercise a multi-tile grid (4 batch tiles x 2 wavelength tiles).
    _run_case(k_b, B=32, D=32, M=8, L=256, b_tile=8, l_tile=128)

    print("KERNEL_OK")
</pallas_src>

<mosaic_0001>
module attributes {stable_mosaic.version = 11 : i64} {
  func.func @plankian_kernel(%arg0: i32, %arg1: i32, %arg2: memref<8x32xf32, #tpu.memory_space<vmem>>, %arg3: memref<32x16xf32, #tpu.memory_space<vmem>>, %arg4: memref<1x16xf32, #tpu.memory_space<vmem>>, %arg5: memref<1x128xf32, #tpu.memory_space<vmem>>, %arg6: memref<8x128xf32, #tpu.memory_space<vmem>>) attributes {dimension_semantics = [#tpu.dimension_semantics<parallel>, #tpu.dimension_semantics<parallel>], iteration_bounds = array<i64: 1, 1>, scalar_prefetch = 0 : i64, scratch_operands = 0 : i64, tpu.core_type = #tpu.core_type<tc>, window_params = [{transform_indices = @transform_0, window_bounds = array<i64: 8, 32>}, {pipeline_mode = #tpu.pipeline_mode<synchronous>, transform_indices = @transform_1, window_bounds = array<i64: 32, 16>}, {pipeline_mode = #tpu.pipeline_mode<synchronous>, transform_indices = @transform_2, window_bounds = array<i64: 1, 16>}, {transform_indices = @transform_3, window_bounds = array<i64: 1, 128>}, {transform_indices = @transform_4, window_bounds = array<i64: 8, 128>}]} {
    %c0 = arith.constant 0 : index
    %c0_0 = arith.constant 0 : index
    %0 = vector.load %arg2[%c0, %c0_0] : memref<8x32xf32, #tpu.memory_space<vmem>>, vector<8x32xf32>
    %c0_1 = arith.constant 0 : index
    %c0_2 = arith.constant 0 : index
    %1 = vector.load %arg3[%c0_1, %c0_2] : memref<32x16xf32, #tpu.memory_space<vmem>>, vector<32x16xf32>
    %cst = arith.constant dense<0.000000e+00> : vector<8x16xf32>
    %2 = tpu.matmul %0, %1, %cst {dimension_numbers = #tpu.dot_dimension_numbers<[1], [0], [0], [1], [0, 0, 1, 1], [], []>} : vector<8x32xf32>, vector<32x16xf32>, vector<8x16xf32> -> vector<8x16xf32>
    %c0_3 = arith.constant 0 : index
    %c0_4 = arith.constant 0 : index
    %3 = vector.load %arg4[%c0_3, %c0_4] : memref<1x16xf32, #tpu.memory_space<vmem>>, vector<1x16xf32>
    %4 = vector.broadcast %3 : vector<1x16xf32> to vector<8x16xf32>
    %5 = arith.addf %2, %4 : vector<8x16xf32>
    %6 = vector.extract_strided_slice %5 {offsets = [0, 0], sizes = [8, 8], strides = [1, 1]} : vector<8x16xf32> to vector<8x8xf32>
    %7 = vector.extract_strided_slice %5 {offsets = [0, 8], sizes = [8, 8], strides = [1, 1]} : vector<8x16xf32> to vector<8x8xf32>
    %8 = math.exp %6 : vector<8x8xf32>
    %cst_5 = arith.constant dense<0xFF800000> : vector<8xf32>
    %9 = vector.multi_reduction <maximumf>, %7, %cst_5 [1] : vector<8x8xf32> to vector<8xf32>
    %10 = vector.shape_cast %9 : vector<8xf32> to vector<8x1xf32>
    %11 = vector.broadcast %10 : vector<8x1xf32> to vector<8x8xf32>
    %12 = arith.subf %7, %11 : vector<8x8xf32>
    %13 = math.exp %12 : vector<8x8xf32>
    %cst_6 = arith.constant dense<0.000000e+00> : vector<8xf32>
    %14 = vector.multi_reduction <add>, %13, %cst_6 [1] : vector<8x8xf32> to vector<8xf32>
    %15 = vector.shape_cast %14 : vector<8xf32> to vector<8x1xf32>
    %cst_7 = arith.constant 0.153989732 : f32
    %16 = vector.broadcast %cst_7 : f32 to vector<8x1xf32>
    %17 = arith.divf %16, %15 : vector<8x1xf32>
    %18 = vector.broadcast %17 : vector<8x1xf32> to vector<8x8xf32>
    %19 = arith.mulf %18, %13 : vector<8x8xf32>
    %c0_8 = arith.constant 0 : index
    %c0_9 = arith.constant 0 : index
    %20 = vector.load %arg5[%c0_8, %c0_9] : memref<1x128xf32, #tpu.memory_space<vmem>>, vector<1x128xf32>
    %cst_10 = arith.constant 0.000000e+00 : f32
    %21 = vector.broadcast %cst_10 : f32 to vector<8x128xf32>
    %cst_11 = arith.constant 0.000000e+00 : f32
    %22 = vector.broadcast %cst_11 : f32 to vector<8x1xf32>
    %23 = vector.extract_strided_slice %8 {offsets = [0, 0], sizes = [8, 1], strides = [1, 1]} : vector<8x8xf32> to vector<8x1xf32>
    %24 = arith.addf %22, %23 : vector<8x1xf32>
    %25 = vector.broadcast %24 : vector<8x1xf32> to vector<8x128xf32>
    %26 = vector.broadcast %20 : vector<1x128xf32> to vector<8x128xf32>
    %27 = arith.mulf %25, %26 : vector<8x128xf32>
    %cst_12 = arith.constant 0.000000e+00 : f32
    %28 = vector.broadcast %cst_12 : f32 to vector<8x128xf32>
    %29 = arith.subf %28, %27 : vector<8x128xf32>
    %30 = math.exp %29 : vector<8x128xf32>
    %31 = arith.mulf %27, %27 : vector<8x128xf32>
    %32 = arith.mulf %31, %31 : vector<8x128xf32>
    %33 = arith.mulf %32, %30 : vector<8x128xf32>
    %cst_13 = arith.constant 1.000000e+00 : f32
    %34 = vector.broadcast %cst_13 : f32 to vector<8x128xf32>
    %35 = arith.subf %34, %30 : vector<8x128xf32>
    %36 = arith.divf %33, %35 : vector<8x128xf32>
    %37 = vector.extract_strided_slice %19 {offsets = [0, 0], sizes = [8, 1], strides = [1, 1]} : vector<8x8xf32> to vector<8x1xf32>
    %38 = vector.broadcast %37 : vector<8x1xf32> to vector<8x128xf32>
    %39 = arith.mulf %38, %36 : vector<8x128xf32>
    %40 = arith.addf %21, %39 : vector<8x128xf32>
    %41 = vector.extract_strided_slice %8 {offsets = [0, 1], sizes = [8, 1], strides = [1, 1]} : vector<8x8xf32> to vector<8x1xf32>
    %42 = arith.addf %24, %41 : vector<8x1xf32>
    %43 = vector.broadcast %42 : vector<8x1xf32> to vector<8x128xf32>
    %44 = vector.broadcast %20 : vector<1x128xf32> to vector<8x128xf32>
    %45 = arith.mulf %43, %44 : vector<8x128xf32>
    %cst_14 = arith.constant 0.000000e+00 : f32
    %46 = vector.broadcast %cst_14 : f32 to vector<8x128xf32>
    %47 = arith.subf %46, %45 : vector<8x128xf32>
    %48 = math.exp %47 : vector<8x128xf32>
    %49 = arith.mulf %45, %45 : vector<8x128xf32>
    %50 = arith.mulf %49, %49 : vector<8x128xf32>
    %51 = arith.mulf %50, %48 : vector<8x128xf32>
    %cst_15 = arith.constant 1.000000e+00 : f32
    %52 = vector.broadcast %cst_15 : f32 to vector<8x128xf32>
    %53 = arith.subf %52, %48 : vector<8x128xf32>
    %54 = arith.divf %51, %53 : vector<8x128xf32>
    %55 = vector.extract_strided_slice %19 {offsets = [0, 1], sizes = [8, 1], strides = [1, 1]} : vector<8x8xf32> to vector<8x1xf32>
    %56 = vector.broadcast %55 : vector<8x1xf32> to vector<8x128xf32>
    %57 = arith.mulf %56, %54 : vector<8x128xf32>
    %58 = arith.addf %40, %57 : vector<8x128xf32>
    %59 = vector.extract_strided_slice %8 {offsets = [0, 2], sizes = [8, 1], strides = [1, 1]} : vector<8x8xf32> to vector<8x1xf32>
    %60 = arith.addf %42, %59 : vector<8x1xf32>
    %61 = vector.broadcast %60 : vector<8x1xf32> to vector<8x128xf32>
    %62 = vector.broadcast %20 : vector<1x128xf32> to vector<8x128xf32>
    %63 = arith.mulf %61, %62 : vector<8x128xf32>
    %cst_16 = arith.constant 0.000000e+00 : f32
    %64 = vector.broadcast %cst_16 : f32 to vector<8x128xf32>
    %65 = arith.subf %64, %63 : vector<8x128xf32>
    %66 = math.exp %65 : vector<8x128xf32>
    %67 = arith.mulf %63, %63 : vector<8x128xf32>
    %68 = arith.mulf %67, %67 : vector<8x128xf32>
    %69 = arith.mulf %68, %66 : vector<8x128xf32>
    %cst_17 = arith.constant 1.000000e+00 : f32
    %70 = vector.broadcast %cst_17 : f32 to vector<8x128xf32>
    %71 = arith.subf %70, %66 : vector<8x128xf32>
    %72 = arith.divf %69, %71 : vector<8x128xf32>
    %73 = vector.extract_strided_slice %19 {offsets = [0, 2], sizes = [8, 1], strides = [1, 1]} : vector<8x8xf32> to vector<8x1xf32>
    %74 = vector.broadcast %73 : vector<8x1xf32> to vector<8x128xf32>
    %75 = arith.mulf %74, %72 : vector<8x128xf32>
    %76 = arith.addf %58, %75 : vector<8x128xf32>
    %77 = vector.extract_strided_slice %8 {offsets = [0, 3], sizes = [8, 1], strides = [1, 1]} : vector<8x8xf32> to vector<8x1xf32>
    %78 = arith.addf %60, %77 : vector<8x1xf32>
    %79 = vector.broadcast %78 : vector<8x1xf32> to vector<8x128xf32>
    %80 = vector.broadcast %20 : vector<1x128xf32> to vector<8x128xf32>
    %81 = arith.mulf %79, %80 : vector<8x128xf32>
    %cst_18 = arith.constant 0.000000e+00 : f32
    %82 = vector.broadcast %cst_18 : f32 to vector<8x128xf32>
    %83 = arith.subf %82, %81 : vector<8x128xf32>
    %84 = math.exp %83 : vector<8x128xf32>
    %85 = arith.mulf %81, %81 : vector<8x128xf32>
    %86 = arith.mulf %85, %85 : vector<8x128xf32>
    %87 = arith.mulf %86, %84 : vector<8x128xf32>
    %cst_19 = arith.constant 1.000000e+00 : f32
    %88 = vector.broadcast %cst_19 : f32 to vector<8x128xf32>
    %89 = arith.subf %88, %84 : vector<8x128xf32>
    %90 = arith.divf %87, %89 : vector<8x128xf32>
    %91 = vector.extract_strided_slice %19 {offsets = [0, 3], sizes = [8, 1], strides = [1, 1]} : vector<8x8xf32> to vector<8x1xf32>
    %92 = vector.broadcast %91 : vector<8x1xf32> to vector<8x128xf32>
    %93 = arith.mulf %92, %90 : vector<8x128xf32>
    %94 = arith.addf %76, %93 : vector<8x128xf32>
    %95 = vector.extract_strided_slice %8 {offsets = [0, 4], sizes = [8, 1], strides = [1, 1]} : vector<8x8xf32> to vector<8x1xf32>
    %96 = arith.addf %78, %95 : vector<8x1xf32>
    %97 = vector.broadcast %96 : vector<8x1xf32> to vector<8x128xf32>
    %98 = vector.broadcast %20 : vector<1x128xf32> to vector<8x128xf32>
    %99 = arith.mulf %97, %98 : vector<8x128xf32>
    %cst_20 = arith.constant 0.000000e+00 : f32
    %100 = vector.broadcast %cst_20 : f32 to vector<8x128xf32>
    %101 = arith.subf %100, %99 : vector<8x128xf32>
    %102 = math.exp %101 : vector<8x128xf32>
    %103 = arith.mulf %99, %99 : vector<8x128xf32>
    %104 = arith.mulf %103, %103 : vector<8x128xf32>
    %105 = arith.mulf %104, %102 : vector<8x128xf32>
    %cst_21 = arith.constant 1.000000e+00 : f32
    %106 = vector.broadcast %cst_21 : f32 to vector<8x128xf32>
    %107 = arith.subf %106, %102 : vector<8x128xf32>
    %108 = arith.divf %105, %107 : vector<8x128xf32>
    %109 = vector.extract_strided_slice %19 {offsets = [0, 4], sizes = [8, 1], strides = [1, 1]} : vector<8x8xf32> to vector<8x1xf32>
    %110 = vector.broadcast %109 : vector<8x1xf32> to vector<8x128xf32>
    %111 = arith.mulf %110, %108 : vector<8x128xf32>
    %112 = arith.addf %94, %111 : vector<8x128xf32>
    %113 = vector.extract_strided_slice %8 {offsets = [0, 5], sizes = [8, 1], strides = [1, 1]} : vector<8x8xf32> to vector<8x1xf32>
    %114 = arith.addf %96, %113 : vector<8x1xf32>
    %115 = vector.broadcast %114 : vector<8x1xf32> to vector<8x128xf32>
    %116 = vector.broadcast %20 : vector<1x128xf32> to vector<8x128xf32>
    %117 = arith.mulf %115, %116 : vector<8x128xf32>
    %cst_22 = arith.constant 0.000000e+00 : f32
    %118 = vector.broadcast %cst_22 : f32 to vector<8x128xf32>
    %119 = arith.subf %118, %117 : vector<8x128xf32>
    %120 = math.exp %119 : vector<8x128xf32>
    %121 = arith.mulf %117, %117 : vector<8x128xf32>
    %122 = arith.mulf %121, %121 : vector<8x128xf32>
    %123 = arith.mulf %122, %120 : vector<8x128xf32>
    %cst_23 = arith.constant 1.000000e+00 : f32
    %124 = vector.broadcast %cst_23 : f32 to vector<8x128xf32>
    %125 = arith.subf %124, %120 : vector<8x128xf32>
    %126 = arith.divf %123, %125 : vector<8x128xf32>
    %127 = vector.extract_strided_slice %19 {offsets = [0, 5], sizes = [8, 1], strides = [1, 1]} : vector<8x8xf32> to vector<8x1xf32>
    %128 = vector.broadcast %127 : vector<8x1xf32> to vector<8x128xf32>
    %129 = arith.mulf %128, %126 : vector<8x128xf32>
    %130 = arith.addf %112, %129 : vector<8x128xf32>
    %131 = vector.extract_strided_slice %8 {offsets = [0, 6], sizes = [8, 1], strides = [1, 1]} : vector<8x8xf32> to vector<8x1xf32>
    %132 = arith.addf %114, %131 : vector<8x1xf32>
    %133 = vector.broadcast %132 : vector<8x1xf32> to vector<8x128xf32>
    %134 = vector.broadcast %20 : vector<1x128xf32> to vector<8x128xf32>
    %135 = arith.mulf %133, %134 : vector<8x128xf32>
    %cst_24 = arith.constant 0.000000e+00 : f32
    %136 = vector.broadcast %cst_24 : f32 to vector<8x128xf32>
    %137 = arith.subf %136, %135 : vector<8x128xf32>
    %138 = math.exp %137 : vector<8x128xf32>
    %139 = arith.mulf %135, %135 : vector<8x128xf32>
    %140 = arith.mulf %139, %139 : vector<8x128xf32>
    %141 = arith.mulf %140, %138 : vector<8x128xf32>
    %cst_25 = arith.constant 1.000000e+00 : f32
    %142 = vector.broadcast %cst_25 : f32 to vector<8x128xf32>
    %143 = arith.subf %142, %138 : vector<8x128xf32>
    %144 = arith.divf %141, %143 : vector<8x128xf32>
    %145 = vector.extract_strided_slice %19 {offsets = [0, 6], sizes = [8, 1], strides = [1, 1]} : vector<8x8xf32> to vector<8x1xf32>
    %146 = vector.broadcast %145 : vector<8x1xf32> to vector<8x128xf32>
    %147 = arith.mulf %146, %144 : vector<8x128xf32>
    %148 = arith.addf %130, %147 : vector<8x128xf32>
    %149 = vector.extract_strided_slice %8 {offsets = [0, 7], sizes = [8, 1], strides = [1, 1]} : vector<8x8xf32> to vector<8x1xf32>
    %150 = arith.addf %132, %149 : vector<8x1xf32>
    %151 = vector.broadcast %150 : vector<8x1xf32> to vector<8x128xf32>
    %152 = vector.broadcast %20 : vector<1x128xf32> to vector<8x128xf32>
    %153 = arith.mulf %151, %152 : vector<8x128xf32>
    %cst_26 = arith.constant 0.000000e+00 : f32
    %154 = vector.broadcast %cst_26 : f32 to vector<8x128xf32>
    %155 = arith.subf %154, %153 : vector<8x128xf32>
    %156 = math.exp %155 : vector<8x128xf32>
    %157 = arith.mulf %153, %153 : vector<8x128xf32>
    %158 = arith.mulf %157, %157 : vector<8x128xf32>
    %159 = arith.mulf %158, %156 : vector<8x128xf32>
    %cst_27 = arith.constant 1.000000e+00 : f32
    %160 = vector.broadcast %cst_27 : f32 to vector<8x128xf32>
    %161 = arith.subf %160, %156 : vector<8x128xf32>
    %162 = arith.divf %159, %161 : vector<8x128xf32>
    %163 = vector.extract_strided_slice %19 {offsets = [0, 7], sizes = [8, 1], strides = [1, 1]} : vector<8x8xf32> to vector<8x1xf32>
    %164 = vector.broadcast %163 : vector<8x1xf32> to vector<8x128xf32>
    %165 = arith.mulf %164, %162 : vector<8x128xf32>
    %166 = arith.addf %148, %165 : vector<8x128xf32>
    %c0_28 = arith.constant 0 : index
    %c0_29 = arith.constant 0 : index
    %167 = vector.load %arg6[%c0_28, %c0_29] : memref<8x128xf32, #tpu.memory_space<vmem>>, vector<8x128xf32>
    tpu.vector_store %arg6[%c0_28, %c0_29], %166 {strides = array<i32>} : memref<8x128xf32, #tpu.memory_space<vmem>>, vector<8x128xf32>,
    return
  }
  func.func @transform_0(%arg0: i32, %arg1: i32) -> (i32, i32) {
    %c0_i32 = arith.constant 0 : i32
    %c0_i32_0 = arith.constant 0 : i32
    return %arg0, %c0_i32 : i32, i32
  }
  func.func @transform_1(%arg0: i32, %arg1: i32) -> (i32, i32) {
    %c0_i32 = arith.constant 0 : i32
    %c0_i32_0 = arith.constant 0 : i32
    %c0_i32_1 = arith.constant 0 : i32
    return %c0_i32, %c0_i32_0 : i32, i32
  }
  func.func @transform_2(%arg0: i32, %arg1: i32) -> (i32, i32) {
    %c0_i32 = arith.constant 0 : i32
    %c0_i32_0 = arith.constant 0 : i32
    %c0_i32_1 = arith.constant 0 : i32
    return %c0_i32, %c0_i32_0 : i32, i32
  }
  func.func @transform_3(%arg0: i32, %arg1: i32) -> (i32, i32) {
    %c0_i32 = arith.constant 0 : i32
    %c0_i32_0 = arith.constant 0 : i32
    return %c0_i32, %arg1 : i32, i32
  }
  func.func @transform_4(%arg0: i32, %arg1: i32) -> (i32, i32) {
    %c0_i32 = arith.constant 0 : i32
    return %arg0, %arg1 : i32, i32
  }
}

</mosaic_0001>

<llo_original>
// kernel: tpu_custom_call.1
$region0: #{tpu_custom_call.1}
  #allocation0 [shape = 'u32[]', space=smem, size = 0x4, offset = 0x4, fixed_abs, tag = 'smem constant byte address 0x4 - core index']
  #allocation1 [shape = 'u32[72,128]{1,0:T(1,128)}', space=vmem, size = 0x9000, scoped, tag = 'internal scratch']
  %s0 = inlined_call_operand.vmem [shape: f32[8,32], index: 0, kind: input, shape index: {}]
  %s1 = inlined_call_operand.vmem [shape: f32[32,16], index: 1, kind: input, shape index: {}]
  %s2 = inlined_call_operand.vmem [shape: f32[1,16], index: 2, kind: input, shape index: {}]
  %s3 = inlined_call_operand.vmem [shape: f32[1,128], index: 3, kind: input, shape index: {}]
  %s4 = inlined_call_operand.hbm [shape: f32[8,128], index: 4, kind: output, shape index: {}]
  %s5 = sld [smem:[#allocation0]]
  $region26: #{tpu_custom_call.1} parent=0
    _
  %s7 = ssub.s32 1, %s5
  %s8 = scalar_select 0, %s7, %s5
  $region1: #{tpu_custom_call.1} parent=0
    #allocation2 [shape = 'u8[4096]{0}', space=vmem, size = 0x1000, scoped, tag = 'output window, operand 0, single buffered']
    #allocation3 [shape = 's32[1]{0}', space=sflag, size = 0x4, scoped, tag = 'scoped memory for tpu_custom_call.1']
    %9 = vsyncpa [#allocation3], 0
    // Predicated region
    $region2: #{tpu_custom_call.1} parent=1 // pred_check
      _
    $region3: #{tpu_custom_call.1} parent=1 // pred_check_branch
      %11 = sbr.rel (0) target = $region5
    $region4: #{tpu_custom_call.1} parent=1 // pred_region
      _
    $region5: #{tpu_custom_call.1} parent=1 // pred_fallthru
      _
    // Predicated region
    $region6: #{tpu_custom_call.1} parent=1 // pred_check
      _
    $region7: #{tpu_custom_call.1} parent=1 // pred_check_branch
      %13 = sbr.rel (0) target = $region9
    $region8: #{tpu_custom_call.1} parent=1 // pred_region
      _
    $region9: #{tpu_custom_call.1} parent=1 // pred_fallthru
      _
    // Predicated region
    $region10: #{tpu_custom_call.1} parent=1 // pred_check
      _
    $region11: #{tpu_custom_call.1} parent=1 // pred_check_branch
      %15 = sbr.rel (0) target = $region13
    $region12: #{tpu_custom_call.1} parent=1 // pred_region
      _
    $region13: #{tpu_custom_call.1} parent=1 // pred_fallthru
      _
    // Predicated region
    $region14: #{tpu_custom_call.1} parent=1 // pred_check
      _
    $region15: #{tpu_custom_call.1} parent=1 // pred_check_branch
      %17 = sbr.rel (0) target = $region17
    $region16: #{tpu_custom_call.1} parent=1 // pred_region
      _
    $region17: #{tpu_custom_call.1} parent=1 // pred_fallthru
      _
    %v18 = vld [vmem:[%s0] sm:$0xff]
    %v19 = vld [vmem:[%s1] sm:$0xff]
    %v20 = vld [vmem:[%s1 + $0x8] sm:$0xff]
    %v21 = vld [vmem:[%s1 + $0x10] sm:$0xff]
    %v22 = vld [vmem:[%s1 + $0x18] sm:$0xff]
    %v23 = vld [vmem:[%s2] sm:$0x1]
    %v25 = vperm.slane %v23, 0
    %vm27 = vcmask 261120
    %v29 = vsel %vm27, %v18, 0
    %31 = vmatpush.msra.mxu0 0.0
    %32 = vmatpush.msra.mxu0 0.0
    %33 = vmatpush.msra.mxu0 0.0
    %34 = vmatpush.msra.mxu0 0.0
    %35 = vmatpush.msra.mxu0 0.0
    %36 = vmatpush.msra.mxu0 0.0
    %37 = vmatpush.msra.mxu0 0.0
    %38 = vmatpush.msra.mxu0 0.0
    %39 = vmatpush.msra.mxu0 0.0
    %40 = vmatpush.msra.mxu0 0.0
    %41 = vmatpush.msra.mxu0 0.0
    %42 = vmatpush.msra.mxu0 0.0
    %43 = vmatpush.msra.mxu0 %v22
    %44 = vmatpush.msra.mxu0 %v21
    %45 = vmatpush.msra.mxu0 %v20
    %46 = vmatpush.msra.mxu0 %v19
    %47 = vmatmul.f32.gmra.mxu0 %v29
    %v48 = vpop.f32.mrf.mxu0
    %v49 = vadd.f32 %v25, %v48
    %50 = vdwg.mxu0
    %v51 = vmul.f32 %v49, 1.442695
    %v52 = vpow.pop %v51
    %vm53 = vcmask 130112
    %v54 = vsel %vm53, %v49, -inf
    %55 = vmax.xlane.f32.xlu0 %v54
    %v56 = vpop.xlane.xlu0 %55
    %v57 = vsub.f32 %v49, %v56
    %v58 = vmul.f32 %v57, 1.442695
    %v59 = vpow.pop %v58
    %61 = vrot.lane.b32.xlu0 %v59, 120
    %v62 = vpop.permute.xlu0 %61
    %vm64 = vcmask 64512
    %v65 = vsel %vm64, %v62, 0.0
    %66 = vadd.xlane.f32.xlu0 %v65
    %v67 = vpop.xlane.xlu0 %66
    %v68 = vrcp.pop %v67
    %v69 = vmul.f32 %v67, %v68
    %v70 = vsub.f32 1.0, %v69
    %v71 = vmul.f32 %v68, %v70
    %v72 = vadd.f32 %v68, %v71
    %vm73 = vweird.f32 %v67
    %vm74 = vweird.f32 %v68
    %vm75 = vmor %vm73, %vm74
    %v76 = vsel %vm75, %v68, %v72
    %v77 = vand.u32 2147483647, %v67
    %vm78 = vcmp.eq.f32.partialorder %v77, 8.507059e+37
    %v79 = vand.u32 %v67, 2147483648
    %v80 = vor.u32 1.1754944e-38, %v79
    %v81 = vsel %vm78, %v80, %v76
    %v82 = vmul.f32 0.15398973, %v81
    %v83 = vmul.f32 %v82, %v59
    %v84 = vld [vmem:[%s3] sm:$0x1]
    %v85 = vadd.f32 %v52, 0.0
    %87 = vset.pattern.permute.xlu0 0
    %88 = vperm.xlu0 %87, %v85
    %v89 = vpop.permute.xlu0 %88
    %v92 = vperm.slane %v84, 0
    %v94 = vmul.f32 %v89, %v92
    %v95 = vsub.f32 0.0, %v94
    %v96 = vmul.f32 %v95, 1.442695
    %v97 = vpow.pop %v96
    %v98 = vmul.f32 %v94, %v94
    %v99 = vmul.f32 %v98, %v98
    %v100 = vmul.f32 %v99, %v97
    %v101 = vsub.f32 1.0, %v97
    %v102 = vrcp.pop %v101
    %v103 = vmul.f32 %v101, %v102
    %v104 = vsub.f32 1.0, %v103
    %v105 = vmul.f32 %v102, %v104
    %v106 = vadd.f32 %v102, %v105
    %vm107 = vweird.f32 %v101
    %vm108 = vweird.f32 %v102
    %vm109 = vmor %vm107, %vm108
    %v110 = vsel %vm109, %v102, %v106
    %v111 = vand.u32 2147483647, %v101
    %vm112 = vcmp.eq.f32.partialorder %v111, 8.507059e+37
    %v113 = vand.u32 %v101, 2147483648
    %v114 = vor.u32 1.1754944e-38, %v113
    %v115 = vsel %vm112, %v114, %v110
    %v116 = vmul.f32 %v100, %v115
    %118 = vset.pattern.permute.xlu0 8
    %119 = vperm.xlu0 %118, %v83
    %v120 = vpop.permute.xlu0 %119
    %v122 = vmul.f32 %v120, %v116
    %v123 = vadd.f32 %v122, 0.0
    %125 = vrot.lane.b32.xlu0 %v52, 127
    %v126 = vpop.permute.xlu0 %125
    %v128 = vadd.f32 %v85, %v126
    %130 = vset.pattern.permute.xlu0 0
    %131 = vperm.xlu0 %130, %v128
    %v132 = vpop.permute.xlu0 %131
    %v134 = vmul.f32 %v132, %v92
    %v135 = vsub.f32 0.0, %v134
    %v136 = vmul.f32 %v135, 1.442695
    %v137 = vpow.pop %v136
    %v138 = vmul.f32 %v134, %v134
    %v139 = vmul.f32 %v138, %v138
    %v140 = vmul.f32 %v139, %v137
    %v141 = vsub.f32 1.0, %v137
    %v142 = vrcp.pop %v141
    %v143 = vmul.f32 %v141, %v142
    %v144 = vsub.f32 1.0, %v143
    %v145 = vmul.f32 %v142, %v144
    %v146 = vadd.f32 %v142, %v145
    %vm147 = vweird.f32 %v141
    %vm148 = vweird.f32 %v142
    %vm149 = vmor %vm147, %vm148
    %v150 = vsel %vm149, %v142, %v146
    %v151 = vand.u32 2147483647, %v141
    %vm152 = vcmp.eq.f32.partialorder %v151, 8.507059e+37
    %v153 = vand.u32 %v141, 2147483648
    %v154 = vor.u32 1.1754944e-38, %v153
    %v155 = vsel %vm152, %v154, %v150
    %v156 = vmul.f32 %v140, %v155
    %157 = vset.pattern.permute.xlu0 9
    %158 = vperm.xlu0 %157, %v83
    %v159 = vpop.permute.xlu0 %158
    %v161 = vmul.f32 %v159, %v156
    %v162 = vadd.f32 %v123, %v161
    %163 = vrot.lane.b32.xlu0 %v52, 126
    %v164 = vpop.permute.xlu0 %163
    %v166 = vadd.f32 %v128, %v164
    %168 = vset.pattern.permute.xlu0 0
    %169 = vperm.xlu0 %168, %v166
    %v170 = vpop.permute.xlu0 %169
    %v172 = vmul.f32 %v170, %v92
    %v173 = vsub.f32 0.0, %v172
    %v174 = vmul.f32 %v173, 1.442695
    %v175 = vpow.pop %v174
    %v176 = vmul.f32 %v172, %v172
    %v177 = vmul.f32 %v176, %v176
    %v178 = vmul.f32 %v177, %v175
    %v179 = vsub.f32 1.0, %v175
    %v180 = vrcp.pop %v179
    %v181 = vmul.f32 %v179, %v180
    %v182 = vsub.f32 1.0, %v181
    %v183 = vmul.f32 %v180, %v182
    %v184 = vadd.f32 %v180, %v183
    %vm185 = vweird.f32 %v179
    %vm186 = vweird.f32 %v180
    %vm187 = vmor %vm185, %vm186
    %v188 = vsel %vm187, %v180, %v184
    %v189 = vand.u32 2147483647, %v179
    %vm190 = vcmp.eq.f32.partialorder %v189, 8.507059e+37
    %v191 = vand.u32 %v179, 2147483648
    %v192 = vor.u32 1.1754944e-38, %v191
    %v193 = vsel %vm190, %v192, %v188
    %v194 = vmul.f32 %v178, %v193
    %195 = vset.pattern.permute.xlu0 10
    %196 = vperm.xlu0 %195, %v83
    %v197 = vpop.permute.xlu0 %196
    %v199 = vmul.f32 %v197, %v194
    %v200 = vadd.f32 %v162, %v199
    %201 = vrot.lane.b32.xlu0 %v52, 125
    %v202 = vpop.permute.xlu0 %201
    %v204 = vadd.f32 %v166, %v202
    %206 = vset.pattern.permute.xlu0 0
    %207 = vperm.xlu0 %206, %v204
    %v208 = vpop.permute.xlu0 %207
    %v210 = vmul.f32 %v208, %v92
    %v211 = vsub.f32 0.0, %v210
    %v212 = vmul.f32 %v211, 1.442695
    %v213 = vpow.pop %v212
    %v214 = vmul.f32 %v210, %v210
    %v215 = vmul.f32 %v214, %v214
    %v216 = vmul.f32 %v215, %v213
    %v217 = vsub.f32 1.0, %v213
    %v218 = vrcp.pop %v217
    %v219 = vmul.f32 %v217, %v218
    %v220 = vsub.f32 1.0, %v219
    %v221 = vmul.f32 %v218, %v220
    %v222 = vadd.f32 %v218, %v221
    %vm223 = vweird.f32 %v217
    %vm224 = vweird.f32 %v218
    %vm225 = vmor %vm223, %vm224
    %v226 = vsel %vm225, %v218, %v222
    %v227 = vand.u32 2147483647, %v217
    %vm228 = vcmp.eq.f32.partialorder %v227, 8.507059e+37
    %v229 = vand.u32 %v217, 2147483648
    %v230 = vor.u32 1.1754944e-38, %v229
    %v231 = vsel %vm228, %v230, %v226
    %v232 = vmul.f32 %v216, %v231
    %233 = vset.pattern.permute.xlu0 11
    %234 = vperm.xlu0 %233, %v83
    %v235 = vpop.permute.xlu0 %234
    %v237 = vmul.f32 %v235, %v232
    %v238 = vadd.f32 %v200, %v237
    %239 = vrot.lane.b32.xlu0 %v52, 124
    %v240 = vpop.permute.xlu0 %239
    %v242 = vadd.f32 %v204, %v240
    %244 = vset.pattern.permute.xlu0 0
    %245 = vperm.xlu0 %244, %v242
    %v246 = vpop.permute.xlu0 %245
    %v248 = vmul.f32 %v246, %v92
    %v249 = vsub.f32 0.0, %v248
    %v250 = vmul.f32 %v249, 1.442695
    %v251 = vpow.pop %v250
    %v252 = vmul.f32 %v248, %v248
    %v253 = vmul.f32 %v252, %v252
    %v254 = vmul.f32 %v253, %v251
    %v255 = vsub.f32 1.0, %v251
    %v256 = vrcp.pop %v255
    %v257 = vmul.f32 %v255, %v256
    %v258 = vsub.f32 1.0, %v257
    %v259 = vmul.f32 %v256, %v258
    %v260 = vadd.f32 %v256, %v259
    %vm261 = vweird.f32 %v255
    %vm262 = vweird.f32 %v256
    %vm263 = vmor %vm261, %vm262
    %v264 = vsel %vm263, %v256, %v260
    %v265 = vand.u32 2147483647, %v255
    %vm266 = vcmp.eq.f32.partialorder %v265, 8.507059e+37
    %v267 = vand.u32 %v255, 2147483648
    %v268 = vor.u32 1.1754944e-38, %v267
    %v269 = vsel %vm266, %v268, %v264
    %v270 = vmul.f32 %v254, %v269
    %271 = vset.pattern.permute.xlu0 12
    %272 = vperm.xlu0 %271, %v83
    %v273 = vpop.permute.xlu0 %272
    %v275 = vmul.f32 %v273, %v270
    %v276 = vadd.f32 %v238, %v275
    %277 = vrot.lane.b32.xlu0 %v52, 123
    %v278 = vpop.permute.xlu0 %277
    %v280 = vadd.f32 %v242, %v278
    %282 = vset.pattern.permute.xlu0 0
    %283 = vperm.xlu0 %282, %v280
    %v284 = vpop.permute.xlu0 %283
    %v286 = vmul.f32 %v284, %v92
    %v287 = vsub.f32 0.0, %v286
    %v288 = vmul.f32 %v287, 1.442695
    %v289 = vpow.pop %v288
    %v290 = vmul.f32 %v286, %v286
    %v291 = vmul.f32 %v290, %v290
    %v292 = vmul.f32 %v291, %v289
    %v293 = vsub.f32 1.0, %v289
    %v294 = vrcp.pop %v293
    %v295 = vmul.f32 %v293, %v294
    %v296 = vsub.f32 1.0, %v295
    %v297 = vmul.f32 %v294, %v296
    %v298 = vadd.f32 %v294, %v297
    %vm299 = vweird.f32 %v293
    %vm300 = vweird.f32 %v294
    %vm301 = vmor %vm299, %vm300
    %v302 = vsel %vm301, %v294, %v298
    %v303 = vand.u32 2147483647, %v293
    %vm304 = vcmp.eq.f32.partialorder %v303, 8.507059e+37
    %v305 = vand.u32 %v293, 2147483648
    %v306 = vor.u32 1.1754944e-38, %v305
    %v307 = vsel %vm304, %v306, %v302
    %v308 = vmul.f32 %v292, %v307
    %309 = vset.pattern.permute.xlu0 13
    %310 = vperm.xlu0 %309, %v83
    %v311 = vpop.permute.xlu0 %310
    %v313 = vmul.f32 %v311, %v308
    %v314 = vadd.f32 %v276, %v313
    %315 = vrot.lane.b32.xlu0 %v52, 122
    %v316 = vpop.permute.xlu0 %315
    %v318 = vadd.f32 %v280, %v316
    %320 = vset.pattern.permute.xlu0 0
    %321 = vperm.xlu0 %320, %v318
    %v322 = vpop.permute.xlu0 %321
    %v324 = vmul.f32 %v322, %v92
    %v325 = vsub.f32 0.0, %v324
    %v326 = vmul.f32 %v325, 1.442695
    %v327 = vpow.pop %v326
    %v328 = vmul.f32 %v324, %v324
    %v329 = vmul.f32 %v328, %v328
    %v330 = vmul.f32 %v329, %v327
    %v331 = vsub.f32 1.0, %v327
    %v332 = vrcp.pop %v331
    %v333 = vmul.f32 %v331, %v332
    %v334 = vsub.f32 1.0, %v333
    %v335 = vmul.f32 %v332, %v334
    %v336 = vadd.f32 %v332, %v335
    %vm337 = vweird.f32 %v331
    %vm338 = vweird.f32 %v332
    %vm339 = vmor %vm337, %vm338
    %v340 = vsel %vm339, %v332, %v336
    %v341 = vand.u32 2147483647, %v331
    %vm342 = vcmp.eq.f32.partialorder %v341, 8.507059e+37
    %v343 = vand.u32 %v331, 2147483648
    %v344 = vor.u32 1.1754944e-38, %v343
    %v345 = vsel %vm342, %v344, %v340
    %v346 = vmul.f32 %v330, %v345
    %347 = vset.pattern.permute.xlu0 14
    %348 = vperm.xlu0 %347, %v83
    %v349 = vpop.permute.xlu0 %348
    %v351 = vmul.f32 %v349, %v346
    %v352 = vadd.f32 %v314, %v351
    %353 = vrot.lane.b32.xlu0 %v52, 121
    %v354 = vpop.permute.xlu0 %353
    %v356 = vadd.f32 %v318, %v354
    %358 = vset.pattern.permute.xlu0 0
    %359 = vperm.xlu0 %358, %v356
    %v360 = vpop.permute.xlu0 %359
    %v362 = vmul.f32 %v360, %v92
    %v363 = vsub.f32 0.0, %v362
    %v364 = vmul.f32 %v363, 1.442695
    %v365 = vpow.pop %v364
    %v366 = vmul.f32 %v362, %v362
    %v367 = vmul.f32 %v366, %v366
    %v368 = vmul.f32 %v367, %v365
    %v369 = vsub.f32 1.0, %v365
    %v370 = vrcp.pop %v369
    %v371 = vmul.f32 %v369, %v370
    %v372 = vsub.f32 1.0, %v371
    %v373 = vmul.f32 %v370, %v372
    %v374 = vadd.f32 %v370, %v373
    %vm375 = vweird.f32 %v369
    %vm376 = vweird.f32 %v370
    %vm377 = vmor %vm375, %vm376
    %v378 = vsel %vm377, %v370, %v374
    %v379 = vand.u32 2147483647, %v369
    %vm380 = vcmp.eq.f32.partialorder %v379, 8.507059e+37
    %v381 = vand.u32 %v369, 2147483648
    %v382 = vor.u32 1.1754944e-38, %v381
    %v383 = vsel %vm380, %v382, %v378
    %v384 = vmul.f32 %v368, %v383
    %385 = vset.pattern.permute.xlu0 15
    %386 = vperm.xlu0 %385, %v83
    %v387 = vpop.permute.xlu0 %386
    %v389 = vmul.f32 %v387, %v384
    %v390 = vadd.f32 %v352, %v389
    %391 = vst [vmem:[#allocation2] sm:$0xff] %v390
    // Predicated region
    $region18: #{tpu_custom_call.1} parent=1 // pred_check
      _
    $region19: #{tpu_custom_call.1} parent=1 // pred_check_branch
      %393 = sbr.rel (0) target = $region21
    $region20: #{tpu_custom_call.1} parent=1 // pred_region
      %395 = vsyncadd [#allocation3], 0
      %s397 = sshll.u32 [#allocation2], 4
      %s398 = int_to_ptr.vmem [resolvable:$true] %s397
      %s399 = sshll.u32 %s4, 4
      %s400 = int_to_ptr.hbm [resolvable:$true] %s399
      %402 = dma.vmem_to_hbm [thread:$0]  %s398, 128, %s400, [#allocation3]
    $region21: #{tpu_custom_call.1} parent=1 // pred_fallthru
      _
    // Predicated region
    $region22: #{tpu_custom_call.1} parent=1 // pred_check
      _
    $region23: #{tpu_custom_call.1} parent=1 // pred_check_branch
      %404 = sbr.rel (0) target = $region25
    $region24: #{tpu_custom_call.1} parent=1 // pred_region
      %406 = dma.done [#allocation3], 128
    $region25: #{tpu_custom_call.1} parent=1 // pred_fallthru
      _
    %407 = vsyncpa [#allocation3], 1

</llo_original>
